<compile_context>
chip_gen: v5e
topology: v5e:2x2
jax: 0.10.0
libtpu: 0.0.40
codegen_flags: <defaults>
</compile_context>

<pallas_src>
import functools

import jax
import jax.numpy as jnp
from jax.experimental import pallas as pl
from jax.experimental.pallas import tpu as pltpu


def _agg_kernel(x_ref, coeff_ref, out_ref, *, k, tile_h, strip_h, W):
    """out[y,x] = sum_{dh,dw} x_pad[t*tile_h + y + dh, x + dw] * coeff[dh*k+dw, y, x].

    x_ref:     (Hp, Wp)         full zero-padded plane for this batch (resident across t)
    coeff_ref: (k*k, tile_h, W) aggregation coefficients for this row band
    out_ref:   (tile_h, W)
    """
    t = pl.program_id(1)
    n_strips = tile_h // strip_h
    aligned = (tile_h % 8 == 0) and (strip_h % 8 == 0)
    for s in range(n_strips):
        row0 = s * strip_h                 # static strip offset within this tile
        band = t * tile_h + row0           # dynamic row offset into the padded plane
        if aligned:
            band = pl.multiple_of(band, 8)
        # Register-resident strip accumulator: one store per strip, no VMEM RMWs.
        acc = jnp.zeros((strip_h, W), jnp.float32)
        for dh in range(k):
            # Load + upcast the (strip_h, Wp) row slab once per dh; the k lane
            # shifts below are value slices (lane rotates), not extra vld's.
            slab = x_ref[pl.ds(band + dh, strip_h), :].astype(jnp.float32)
            for dw in range(k):
                c = dh * k + dw
                coef = coeff_ref[c, row0:row0 + strip_h, :].astype(jnp.float32)
                acc = acc + slab[:, dw:dw + W] * coef
        out_ref[row0:row0 + strip_h, :] = acc.astype(out_ref.dtype)


def _layout_padded_bytes(shape, dtype):
    """VMEM bytes of one buffer including (sublane, lane) layout padding."""
    itemsize = jnp.dtype(dtype).itemsize
    packing = max(1, 4 // itemsize)
    dims = list(shape)
    dims[-1] = -(-dims[-1] // 128) * 128
    if len(dims) >= 2:
        granule = 8 * packing
        dims[-2] = -(-dims[-2] // granule) * granule
    n = 1
    for d in dims:
        n *= d
    return n * itemsize


def _vmem_capacity_bytes():
    try:
        info = pltpu.get_tpu_info()
        cap = getattr(info, "vmem_capacity_bytes", None)
        if cap:
            return int(cap)
    except Exception:
        pass
    return 64 << 20  # conservative (v7x-sized) default


def _choose_tile_h(H, W, k, coeff_dtype, out_dtype, coeff_budget_bytes):
    """Largest tile_h (sublane-granule multiple dividing H) whose double-buffered
    coeff block (with lane padding) stays under coeff_budget_bytes."""
    granules = [8 * max(1, 4 // jnp.dtype(d).itemsize) for d in (coeff_dtype, out_dtype)]
    base = max(granules)               # 8 for f32, 16 for bf16, 32 for int8/fp8
    if H % base != 0:
        base = 8
    if H % base != 0:
        # TODO(synk): support H not a multiple of 8 via masked edge tiles.
        return H
    w_pad = -(-W // 128) * 128
    per_row = 2 * k * k * w_pad * jnp.dtype(coeff_dtype).itemsize  # dbl-buffered bytes/row
    max_rows = max(base, coeff_budget_bytes // per_row)
    t = max(base, min(H, (max_rows // base) * base))
    while H % t != 0:
        t -= base
    return t


def adaptive_aggregation_multi(x, agg_coeff, pn_size=5, tile_h=None):
    """x: (B, 1, H, W); agg_coeff: (B, pn_size**2, H, W) -> (B, 1, H, W).

    agg_coeff may be bf16 (recommended: it dominates HBM traffic and the op is
    memory-bound); the kernel accumulates in f32 regardless of input dtypes.
    """
    B, C, H, W = x.shape
    assert C == 1, "max_prob_input must have a single channel"
    k = pn_size
    pad = k // 2
    assert agg_coeff.shape == (B, k * k, H, W)

    vmem_cap = _vmem_capacity_bytes()
    coeff_budget = max(8 << 20, vmem_cap // 4)   # ~16 MiB (v7x) / ~32 MiB (v5e/v6e)

    out_dtype = x.dtype
    if tile_h is None:
        tile_h = _choose_tile_h(H, W, k, agg_coeff.dtype, out_dtype, coeff_budget)
    assert H % tile_h == 0, "tile_h must divide H"
    n_t = H // tile_h

    strip_h = 8 if jnp.dtype(out_dtype).itemsize >= 4 else 16
    if tile_h % strip_h != 0:
        strip_h = 8 if tile_h % 8 == 0 else tile_h

    Hp, Wp = H + 2 * pad, W + 2 * pad

    # Zero-pad once.  The x block index is constant across the t axis, so the
    # padded plane is DMA'd to VMEM once per batch (no duplicated halo bands).
    x_pad = jnp.pad(x[:, 0], ((0, 0), (pad, pad), (pad, pad)))       # (B, Hp, Wp)

    # VMEM budget: double-buffered x / coeff / out blocks incl. layout padding.
    vmem_est = (2 * _layout_padded_bytes((Hp, Wp), x.dtype)
                + 2 * _layout_padded_bytes((k * k, tile_h, W), agg_coeff.dtype)
                + 2 * _layout_padded_bytes((tile_h, W), out_dtype))
    vmem_limit = int(min(max(int(vmem_est * 1.25) + (2 << 20), 16 << 20),
                         max(16 << 20, int(vmem_cap * 0.85))))

    kern = functools.partial(_agg_kernel, k=k, tile_h=tile_h, strip_h=strip_h, W=W)
    out = pl.pallas_call(
        kern,
        out_shape=jax.ShapeDtypeStruct((B, H, W), out_dtype),
        grid_spec=pltpu.PrefetchScalarGridSpec(
            num_scalar_prefetch=0,
            grid=(B, n_t),
            in_specs=[
                # full zero-padded plane for this batch; index constant over t
                pl.BlockSpec((None, Hp, Wp), lambda b, t: (b, 0, 0)),
                # all k*k coeff planes for this row band (the pipelined stream)
                pl.BlockSpec((None, k * k, tile_h, W), lambda b, t: (b, 0, t, 0)),
            ],
            out_specs=pl.BlockSpec((None, tile_h, W), lambda b, t: (b, t, 0)),
        ),
        compiler_params=pltpu.CompilerParams(
            dimension_semantics=("parallel", "parallel"),
            vmem_limit_bytes=vmem_limit),
    )(x_pad, agg_coeff)
    return out[:, None]                                              # (B, 1, H, W)


def _reference(x, agg_coeff, pn_size=5):
    """Pure-JAX reference matching F.conv2d with the mapping kernel."""
    B, _, H, W = x.shape
    k = pn_size
    pad = k // 2
    x_pad = jnp.pad(x[:, 0], ((0, 0), (pad, pad), (pad, pad)))
    out = jnp.zeros((B, H, W), jnp.float32)
    for dh in range(k):
        for dw in range(k):
            c = dh * k + dw
            out = out + (x_pad[:, dh:dh + H, dw:dw + W].astype(jnp.float32) *
                         agg_coeff[:, c].astype(jnp.float32))
    return out[:, None].astype(x.dtype)


if __name__ == "__main__":
    key = jax.random.PRNGKey(0)
    k1, k2 = jax.random.split(key)

    B, H, W = 2, 16, 16
    pn_size = 5

    # max_prob_input: single-channel confidence map (e.g. softmax max-prob).
    x = jax.random.uniform(k1, (B, 1, H, W), dtype=jnp.float32)
    # agg_coeff: per-pixel aggregation coefficients over the k*k neighborhood.
    coeff_f32 = jax.random.uniform(k2, (B, pn_size * pn_size, H, W),
                                   dtype=jnp.float32)

    # 1) f32 coeff, explicit tile_h=8 -> grid (B=2, n_t=2): exercises the
    #    multi-tile path with the padded x plane resident across t.
    out = adaptive_aggregation_multi(x, coeff_f32, pn_size=pn_size, tile_h=8)
    out = jax.block_until_ready(out)
    ref = _reference(x, coeff_f32, pn_size=pn_size)
    assert out.shape == (B, 1, H, W)
    assert jnp.allclose(out, ref, atol=1e-5, rtol=1e-5), "f32 mismatch vs reference"

    # 2) bf16 coeff stream (halves the dominant HBM traffic), auto tile_h:
    #    exercises the multi-strip path; validated against the same bf16 coeffs.
    coeff_bf16 = coeff_f32.astype(jnp.bfloat16)
    out_b = adaptive_aggregation_multi(x, coeff_bf16, pn_size=pn_size)
    out_b = jax.block_until_ready(out_b)
    ref_b = _reference(x, coeff_bf16, pn_size=pn_size)
    assert jnp.allclose(out_b, ref_b, atol=1e-4, rtol=1e-4), "bf16 mismatch vs reference"

    print("KERNEL_OK")
</pallas_src>

<mosaic_0001>
module attributes {stable_mosaic.version = 11 : i64} {
  func.func @_agg_kernel(%arg0: i32, %arg1: i32, %arg2: memref<1x20x20xf32, #tpu.memory_space<vmem>>, %arg3: memref<1x25x8x16xf32, #tpu.memory_space<vmem>>, %arg4: memref<1x8x16xf32, #tpu.memory_space<vmem>>) attributes {dimension_semantics = [#tpu.dimension_semantics<parallel>, #tpu.dimension_semantics<parallel>], iteration_bounds = array<i64: 2, 2>, scalar_prefetch = 0 : i64, scratch_operands = 0 : i64, tpu.core_type = #tpu.core_type<tc>, window_params = [{transform_indices = @transform_0, window_bounds = array<i64: 1, 20, 20>}, {transform_indices = @transform_1, window_bounds = array<i64: 1, 25, 8, 16>}, {transform_indices = @transform_2, window_bounds = array<i64: 1, 8, 16>}]} {
    %c8_i32 = arith.constant 8 : i32
    %0 = arith.muli %arg1, %c8_i32 : i32
    %c0_i32 = arith.constant 0 : i32
    %1 = arith.addi %0, %c0_i32 : i32
    %2 = tpu.assume_multiple %1, 8 : i32
    %cst = arith.constant 0.000000e+00 : f32
    %3 = vector.broadcast %cst : f32 to vector<8x16xf32>
    %c0_i32_0 = arith.constant 0 : i32
    %4 = arith.addi %2, %c0_i32_0 : i32
    %c0 = arith.constant 0 : index
    %5 = arith.index_cast %4 : i32 to index
    %c0_1 = arith.constant 0 : index
    %6 = vector.load %arg2[%c0, %5, %c0_1] : memref<1x20x20xf32, #tpu.memory_space<vmem>>, vector<1x8x20xf32>
    %7 = vector.shape_cast %6 : vector<1x8x20xf32> to vector<8x20xf32>
    %c0_2 = arith.constant 0 : index
    %c0_3 = arith.constant 0 : index
    %c0_4 = arith.constant 0 : index
    %c0_5 = arith.constant 0 : index
    %8 = vector.load %arg3[%c0_2, %c0_3, %c0_4, %c0_5] : memref<1x25x8x16xf32, #tpu.memory_space<vmem>>, vector<1x1x8x16xf32>
    %9 = vector.shape_cast %8 : vector<1x1x8x16xf32> to vector<8x16xf32>
    %10 = vector.extract_strided_slice %7 {offsets = [0, 0], sizes = [8, 16], strides = [1, 1]} : vector<8x20xf32> to vector<8x16xf32>
    %11 = arith.mulf %10, %9 : vector<8x16xf32>
    %12 = arith.addf %3, %11 : vector<8x16xf32>
    %c0_6 = arith.constant 0 : index
    %c1 = arith.constant 1 : index
    %c0_7 = arith.constant 0 : index
    %c0_8 = arith.constant 0 : index
    %13 = vector.load %arg3[%c0_6, %c1, %c0_7, %c0_8] : memref<1x25x8x16xf32, #tpu.memory_space<vmem>>, vector<1x1x8x16xf32>
    %14 = vector.shape_cast %13 : vector<1x1x8x16xf32> to vector<8x16xf32>
    %15 = vector.extract_strided_slice %7 {offsets = [0, 1], sizes = [8, 16], strides = [1, 1]} : vector<8x20xf32> to vector<8x16xf32>
    %16 = arith.mulf %15, %14 : vector<8x16xf32>
    %17 = arith.addf %12, %16 : vector<8x16xf32>
    %c0_9 = arith.constant 0 : index
    %c2 = arith.constant 2 : index
    %c0_10 = arith.constant 0 : index
    %c0_11 = arith.constant 0 : index
    %18 = vector.load %arg3[%c0_9, %c2, %c0_10, %c0_11] : memref<1x25x8x16xf32, #tpu.memory_space<vmem>>, vector<1x1x8x16xf32>
    %19 = vector.shape_cast %18 : vector<1x1x8x16xf32> to vector<8x16xf32>
    %20 = vector.extract_strided_slice %7 {offsets = [0, 2], sizes = [8, 16], strides = [1, 1]} : vector<8x20xf32> to vector<8x16xf32>
    %21 = arith.mulf %20, %19 : vector<8x16xf32>
    %22 = arith.addf %17, %21 : vector<8x16xf32>
    %c0_12 = arith.constant 0 : index
    %c3 = arith.constant 3 : index
    %c0_13 = arith.constant 0 : index
    %c0_14 = arith.constant 0 : index
    %23 = vector.load %arg3[%c0_12, %c3, %c0_13, %c0_14] : memref<1x25x8x16xf32, #tpu.memory_space<vmem>>, vector<1x1x8x16xf32>
    %24 = vector.shape_cast %23 : vector<1x1x8x16xf32> to vector<8x16xf32>
    %25 = vector.extract_strided_slice %7 {offsets = [0, 3], sizes = [8, 16], strides = [1, 1]} : vector<8x20xf32> to vector<8x16xf32>
    %26 = arith.mulf %25, %24 : vector<8x16xf32>
    %27 = arith.addf %22, %26 : vector<8x16xf32>
    %c0_15 = arith.constant 0 : index
    %c4 = arith.constant 4 : index
    %c0_16 = arith.constant 0 : index
    %c0_17 = arith.constant 0 : index
    %28 = vector.load %arg3[%c0_15, %c4, %c0_16, %c0_17] : memref<1x25x8x16xf32, #tpu.memory_space<vmem>>, vector<1x1x8x16xf32>
    %29 = vector.shape_cast %28 : vector<1x1x8x16xf32> to vector<8x16xf32>
    %30 = vector.extract_strided_slice %7 {offsets = [0, 4], sizes = [8, 16], strides = [1, 1]} : vector<8x20xf32> to vector<8x16xf32>
    %31 = arith.mulf %30, %29 : vector<8x16xf32>
    %32 = arith.addf %27, %31 : vector<8x16xf32>
    %c1_i32 = arith.constant 1 : i32
    %33 = arith.addi %2, %c1_i32 : i32
    %c0_18 = arith.constant 0 : index
    %34 = arith.index_cast %33 : i32 to index
    %c0_19 = arith.constant 0 : index
    %35 = vector.load %arg2[%c0_18, %34, %c0_19] : memref<1x20x20xf32, #tpu.memory_space<vmem>>, vector<1x8x20xf32>
    %36 = vector.shape_cast %35 : vector<1x8x20xf32> to vector<8x20xf32>
    %c0_20 = arith.constant 0 : index
    %c5 = arith.constant 5 : index
    %c0_21 = arith.constant 0 : index
    %c0_22 = arith.constant 0 : index
    %37 = vector.load %arg3[%c0_20, %c5, %c0_21, %c0_22] : memref<1x25x8x16xf32, #tpu.memory_space<vmem>>, vector<1x1x8x16xf32>
    %38 = vector.shape_cast %37 : vector<1x1x8x16xf32> to vector<8x16xf32>
    %39 = vector.extract_strided_slice %36 {offsets = [0, 0], sizes = [8, 16], strides = [1, 1]} : vector<8x20xf32> to vector<8x16xf32>
    %40 = arith.mulf %39, %38 : vector<8x16xf32>
    %41 = arith.addf %32, %40 : vector<8x16xf32>
    %c0_23 = arith.constant 0 : index
    %c6 = arith.constant 6 : index
    %c0_24 = arith.constant 0 : index
    %c0_25 = arith.constant 0 : index
    %42 = vector.load %arg3[%c0_23, %c6, %c0_24, %c0_25] : memref<1x25x8x16xf32, #tpu.memory_space<vmem>>, vector<1x1x8x16xf32>
    %43 = vector.shape_cast %42 : vector<1x1x8x16xf32> to vector<8x16xf32>
    %44 = vector.extract_strided_slice %36 {offsets = [0, 1], sizes = [8, 16], strides = [1, 1]} : vector<8x20xf32> to vector<8x16xf32>
    %45 = arith.mulf %44, %43 : vector<8x16xf32>
    %46 = arith.addf %41, %45 : vector<8x16xf32>
    %c0_26 = arith.constant 0 : index
    %c7 = arith.constant 7 : index
    %c0_27 = arith.constant 0 : index
    %c0_28 = arith.constant 0 : index
    %47 = vector.load %arg3[%c0_26, %c7, %c0_27, %c0_28] : memref<1x25x8x16xf32, #tpu.memory_space<vmem>>, vector<1x1x8x16xf32>
    %48 = vector.shape_cast %47 : vector<1x1x8x16xf32> to vector<8x16xf32>
    %49 = vector.extract_strided_slice %36 {offsets = [0, 2], sizes = [8, 16], strides = [1, 1]} : vector<8x20xf32> to vector<8x16xf32>
    %50 = arith.mulf %49, %48 : vector<8x16xf32>
    %51 = arith.addf %46, %50 : vector<8x16xf32>
    %c0_29 = arith.constant 0 : index
    %c8 = arith.constant 8 : index
    %c0_30 = arith.constant 0 : index
    %c0_31 = arith.constant 0 : index
    %52 = vector.load %arg3[%c0_29, %c8, %c0_30, %c0_31] : memref<1x25x8x16xf32, #tpu.memory_space<vmem>>, vector<1x1x8x16xf32>
    %53 = vector.shape_cast %52 : vector<1x1x8x16xf32> to vector<8x16xf32>
    %54 = vector.extract_strided_slice %36 {offsets = [0, 3], sizes = [8, 16], strides = [1, 1]} : vector<8x20xf32> to vector<8x16xf32>
    %55 = arith.mulf %54, %53 : vector<8x16xf32>
    %56 = arith.addf %51, %55 : vector<8x16xf32>
    %c0_32 = arith.constant 0 : index
    %c9 = arith.constant 9 : index
    %c0_33 = arith.constant 0 : index
    %c0_34 = arith.constant 0 : index
    %57 = vector.load %arg3[%c0_32, %c9, %c0_33, %c0_34] : memref<1x25x8x16xf32, #tpu.memory_space<vmem>>, vector<1x1x8x16xf32>
    %58 = vector.shape_cast %57 : vector<1x1x8x16xf32> to vector<8x16xf32>
    %59 = vector.extract_strided_slice %36 {offsets = [0, 4], sizes = [8, 16], strides = [1, 1]} : vector<8x20xf32> to vector<8x16xf32>
    %60 = arith.mulf %59, %58 : vector<8x16xf32>
    %61 = arith.addf %56, %60 : vector<8x16xf32>
    %c2_i32 = arith.constant 2 : i32
    %62 = arith.addi %2, %c2_i32 : i32
    %c0_35 = arith.constant 0 : index
    %63 = arith.index_cast %62 : i32 to index
    %c0_36 = arith.constant 0 : index
    %64 = vector.load %arg2[%c0_35, %63, %c0_36] : memref<1x20x20xf32, #tpu.memory_space<vmem>>, vector<1x8x20xf32>
    %65 = vector.shape_cast %64 : vector<1x8x20xf32> to vector<8x20xf32>
    %c0_37 = arith.constant 0 : index
    %c10 = arith.constant 10 : index
    %c0_38 = arith.constant 0 : index
    %c0_39 = arith.constant 0 : index
    %66 = vector.load %arg3[%c0_37, %c10, %c0_38, %c0_39] : memref<1x25x8x16xf32, #tpu.memory_space<vmem>>, vector<1x1x8x16xf32>
    %67 = vector.shape_cast %66 : vector<1x1x8x16xf32> to vector<8x16xf32>
    %68 = vector.extract_strided_slice %65 {offsets = [0, 0], sizes = [8, 16], strides = [1, 1]} : vector<8x20xf32> to vector<8x16xf32>
    %69 = arith.mulf %68, %67 : vector<8x16xf32>
    %70 = arith.addf %61, %69 : vector<8x16xf32>
    %c0_40 = arith.constant 0 : index
    %c11 = arith.constant 11 : index
    %c0_41 = arith.constant 0 : index
    %c0_42 = arith.constant 0 : index
    %71 = vector.load %arg3[%c0_40, %c11, %c0_41, %c0_42] : memref<1x25x8x16xf32, #tpu.memory_space<vmem>>, vector<1x1x8x16xf32>
    %72 = vector.shape_cast %71 : vector<1x1x8x16xf32> to vector<8x16xf32>
    %73 = vector.extract_strided_slice %65 {offsets = [0, 1], sizes = [8, 16], strides = [1, 1]} : vector<8x20xf32> to vector<8x16xf32>
    %74 = arith.mulf %73, %72 : vector<8x16xf32>
    %75 = arith.addf %70, %74 : vector<8x16xf32>
    %c0_43 = arith.constant 0 : index
    %c12 = arith.constant 12 : index
    %c0_44 = arith.constant 0 : index
    %c0_45 = arith.constant 0 : index
    %76 = vector.load %arg3[%c0_43, %c12, %c0_44, %c0_45] : memref<1x25x8x16xf32, #tpu.memory_space<vmem>>, vector<1x1x8x16xf32>
    %77 = vector.shape_cast %76 : vector<1x1x8x16xf32> to vector<8x16xf32>
    %78 = vector.extract_strided_slice %65 {offsets = [0, 2], sizes = [8, 16], strides = [1, 1]} : vector<8x20xf32> to vector<8x16xf32>
    %79 = arith.mulf %78, %77 : vector<8x16xf32>
    %80 = arith.addf %75, %79 : vector<8x16xf32>
    %c0_46 = arith.constant 0 : index
    %c13 = arith.constant 13 : index
    %c0_47 = arith.constant 0 : index
    %c0_48 = arith.constant 0 : index
    %81 = vector.load %arg3[%c0_46, %c13, %c0_47, %c0_48] : memref<1x25x8x16xf32, #tpu.memory_space<vmem>>, vector<1x1x8x16xf32>
    %82 = vector.shape_cast %81 : vector<1x1x8x16xf32> to vector<8x16xf32>
    %83 = vector.extract_strided_slice %65 {offsets = [0, 3], sizes = [8, 16], strides = [1, 1]} : vector<8x20xf32> to vector<8x16xf32>
    %84 = arith.mulf %83, %82 : vector<8x16xf32>
    %85 = arith.addf %80, %84 : vector<8x16xf32>
    %c0_49 = arith.constant 0 : index
    %c14 = arith.constant 14 : index
    %c0_50 = arith.constant 0 : index
    %c0_51 = arith.constant 0 : index
    %86 = vector.load %arg3[%c0_49, %c14, %c0_50, %c0_51] : memref<1x25x8x16xf32, #tpu.memory_space<vmem>>, vector<1x1x8x16xf32>
    %87 = vector.shape_cast %86 : vector<1x1x8x16xf32> to vector<8x16xf32>
    %88 = vector.extract_strided_slice %65 {offsets = [0, 4], sizes = [8, 16], strides = [1, 1]} : vector<8x20xf32> to vector<8x16xf32>
    %89 = arith.mulf %88, %87 : vector<8x16xf32>
    %90 = arith.addf %85, %89 : vector<8x16xf32>
    %c3_i32 = arith.constant 3 : i32
    %91 = arith.addi %2, %c3_i32 : i32
    %c0_52 = arith.constant 0 : index
    %92 = arith.index_cast %91 : i32 to index
    %c0_53 = arith.constant 0 : index
    %93 = vector.load %arg2[%c0_52, %92, %c0_53] : memref<1x20x20xf32, #tpu.memory_space<vmem>>, vector<1x8x20xf32>
    %94 = vector.shape_cast %93 : vector<1x8x20xf32> to vector<8x20xf32>
    %c0_54 = arith.constant 0 : index
    %c15 = arith.constant 15 : index
    %c0_55 = arith.constant 0 : index
    %c0_56 = arith.constant 0 : index
    %95 = vector.load %arg3[%c0_54, %c15, %c0_55, %c0_56] : memref<1x25x8x16xf32, #tpu.memory_space<vmem>>, vector<1x1x8x16xf32>
    %96 = vector.shape_cast %95 : vector<1x1x8x16xf32> to vector<8x16xf32>
    %97 = vector.extract_strided_slice %94 {offsets = [0, 0], sizes = [8, 16], strides = [1, 1]} : vector<8x20xf32> to vector<8x16xf32>
    %98 = arith.mulf %97, %96 : vector<8x16xf32>
    %99 = arith.addf %90, %98 : vector<8x16xf32>
    %c0_57 = arith.constant 0 : index
    %c16 = arith.constant 16 : index
    %c0_58 = arith.constant 0 : index
    %c0_59 = arith.constant 0 : index
    %100 = vector.load %arg3[%c0_57, %c16, %c0_58, %c0_59] : memref<1x25x8x16xf32, #tpu.memory_space<vmem>>, vector<1x1x8x16xf32>
    %101 = vector.shape_cast %100 : vector<1x1x8x16xf32> to vector<8x16xf32>
    %102 = vector.extract_strided_slice %94 {offsets = [0, 1], sizes = [8, 16], strides = [1, 1]} : vector<8x20xf32> to vector<8x16xf32>
    %103 = arith.mulf %102, %101 : vector<8x16xf32>
    %104 = arith.addf %99, %103 : vector<8x16xf32>
    %c0_60 = arith.constant 0 : index
    %c17 = arith.constant 17 : index
    %c0_61 = arith.constant 0 : index
    %c0_62 = arith.constant 0 : index
    %105 = vector.load %arg3[%c0_60, %c17, %c0_61, %c0_62] : memref<1x25x8x16xf32, #tpu.memory_space<vmem>>, vector<1x1x8x16xf32>
    %106 = vector.shape_cast %105 : vector<1x1x8x16xf32> to vector<8x16xf32>
    %107 = vector.extract_strided_slice %94 {offsets = [0, 2], sizes = [8, 16], strides = [1, 1]} : vector<8x20xf32> to vector<8x16xf32>
    %108 = arith.mulf %107, %106 : vector<8x16xf32>
    %109 = arith.addf %104, %108 : vector<8x16xf32>
    %c0_63 = arith.constant 0 : index
    %c18 = arith.constant 18 : index
    %c0_64 = arith.constant 0 : index
    %c0_65 = arith.constant 0 : index
    %110 = vector.load %arg3[%c0_63, %c18, %c0_64, %c0_65] : memref<1x25x8x16xf32, #tpu.memory_space<vmem>>, vector<1x1x8x16xf32>
    %111 = vector.shape_cast %110 : vector<1x1x8x16xf32> to vector<8x16xf32>
    %112 = vector.extract_strided_slice %94 {offsets = [0, 3], sizes = [8, 16], strides = [1, 1]} : vector<8x20xf32> to vector<8x16xf32>
    %113 = arith.mulf %112, %111 : vector<8x16xf32>
    %114 = arith.addf %109, %113 : vector<8x16xf32>
    %c0_66 = arith.constant 0 : index
    %c19 = arith.constant 19 : index
    %c0_67 = arith.constant 0 : index
    %c0_68 = arith.constant 0 : index
    %115 = vector.load %arg3[%c0_66, %c19, %c0_67, %c0_68] : memref<1x25x8x16xf32, #tpu.memory_space<vmem>>, vector<1x1x8x16xf32>
    %116 = vector.shape_cast %115 : vector<1x1x8x16xf32> to vector<8x16xf32>
    %117 = vector.extract_strided_slice %94 {offsets = [0, 4], sizes = [8, 16], strides = [1, 1]} : vector<8x20xf32> to vector<8x16xf32>
    %118 = arith.mulf %117, %116 : vector<8x16xf32>
    %119 = arith.addf %114, %118 : vector<8x16xf32>
    %c4_i32 = arith.constant 4 : i32
    %120 = arith.addi %2, %c4_i32 : i32
    %c0_69 = arith.constant 0 : index
    %121 = arith.index_cast %120 : i32 to index
    %c0_70 = arith.constant 0 : index
    %122 = vector.load %arg2[%c0_69, %121, %c0_70] : memref<1x20x20xf32, #tpu.memory_space<vmem>>, vector<1x8x20xf32>
    %123 = vector.shape_cast %122 : vector<1x8x20xf32> to vector<8x20xf32>
    %c0_71 = arith.constant 0 : index
    %c20 = arith.constant 20 : index
    %c0_72 = arith.constant 0 : index
    %c0_73 = arith.constant 0 : index
    %124 = vector.load %arg3[%c0_71, %c20, %c0_72, %c0_73] : memref<1x25x8x16xf32, #tpu.memory_space<vmem>>, vector<1x1x8x16xf32>
    %125 = vector.shape_cast %124 : vector<1x1x8x16xf32> to vector<8x16xf32>
    %126 = vector.extract_strided_slice %123 {offsets = [0, 0], sizes = [8, 16], strides = [1, 1]} : vector<8x20xf32> to vector<8x16xf32>
    %127 = arith.mulf %126, %125 : vector<8x16xf32>
    %128 = arith.addf %119, %127 : vector<8x16xf32>
    %c0_74 = arith.constant 0 : index
    %c21 = arith.constant 21 : index
    %c0_75 = arith.constant 0 : index
    %c0_76 = arith.constant 0 : index
    %129 = vector.load %arg3[%c0_74, %c21, %c0_75, %c0_76] : memref<1x25x8x16xf32, #tpu.memory_space<vmem>>, vector<1x1x8x16xf32>
    %130 = vector.shape_cast %129 : vector<1x1x8x16xf32> to vector<8x16xf32>
    %131 = vector.extract_strided_slice %123 {offsets = [0, 1], sizes = [8, 16], strides = [1, 1]} : vector<8x20xf32> to vector<8x16xf32>
    %132 = arith.mulf %131, %130 : vector<8x16xf32>
    %133 = arith.addf %128, %132 : vector<8x16xf32>
    %c0_77 = arith.constant 0 : index
    %c22 = arith.constant 22 : index
    %c0_78 = arith.constant 0 : index
    %c0_79 = arith.constant 0 : index
    %134 = vector.load %arg3[%c0_77, %c22, %c0_78, %c0_79] : memref<1x25x8x16xf32, #tpu.memory_space<vmem>>, vector<1x1x8x16xf32>
    %135 = vector.shape_cast %134 : vector<1x1x8x16xf32> to vector<8x16xf32>
    %136 = vector.extract_strided_slice %123 {offsets = [0, 2], sizes = [8, 16], strides = [1, 1]} : vector<8x20xf32> to vector<8x16xf32>
    %137 = arith.mulf %136, %135 : vector<8x16xf32>
    %138 = arith.addf %133, %137 : vector<8x16xf32>
    %c0_80 = arith.constant 0 : index
    %c23 = arith.constant 23 : index
    %c0_81 = arith.constant 0 : index
    %c0_82 = arith.constant 0 : index
    %139 = vector.load %arg3[%c0_80, %c23, %c0_81, %c0_82] : memref<1x25x8x16xf32, #tpu.memory_space<vmem>>, vector<1x1x8x16xf32>
    %140 = vector.shape_cast %139 : vector<1x1x8x16xf32> to vector<8x16xf32>
    %141 = vector.extract_strided_slice %123 {offsets = [0, 3], sizes = [8, 16], strides = [1, 1]} : vector<8x20xf32> to vector<8x16xf32>
    %142 = arith.mulf %141, %140 : vector<8x16xf32>
    %143 = arith.addf %138, %142 : vector<8x16xf32>
    %c0_83 = arith.constant 0 : index
    %c24 = arith.constant 24 : index
    %c0_84 = arith.constant 0 : index
    %c0_85 = arith.constant 0 : index
    %144 = vector.load %arg3[%c0_83, %c24, %c0_84, %c0_85] : memref<1x25x8x16xf32, #tpu.memory_space<vmem>>, vector<1x1x8x16xf32>
    %145 = vector.shape_cast %144 : vector<1x1x8x16xf32> to vector<8x16xf32>
    %146 = vector.extract_strided_slice %123 {offsets = [0, 4], sizes = [8, 16], strides = [1, 1]} : vector<8x20xf32> to vector<8x16xf32>
    %147 = arith.mulf %146, %145 : vector<8x16xf32>
    %148 = arith.addf %143, %147 : vector<8x16xf32>
    %c0_86 = arith.constant 0 : index
    %c0_87 = arith.constant 0 : index
    %c0_88 = arith.constant 0 : index
    %149 = vector.load %arg4[%c0_86, %c0_87, %c0_88] : memref<1x8x16xf32, #tpu.memory_space<vmem>>, vector<1x8x16xf32>
    %150 = vector.shape_cast %149 : vector<1x8x16xf32> to vector<8x16xf32>
    %151 = vector.shape_cast %148 : vector<8x16xf32> to vector<1x8x16xf32>
    tpu.vector_store %arg4[%c0_86, %c0_87, %c0_88], %151 {strides = array<i32>} : memref<1x8x16xf32, #tpu.memory_space<vmem>>, vector<1x8x16xf32>,
    return
  }
  func.func @transform_0(%arg0: i32, %arg1: i32) -> (i32, i32, i32) {
    %c0_i32 = arith.constant 0 : i32
    %c0_i32_0 = arith.constant 0 : i32
    %c0_i32_1 = arith.constant 0 : i32
    return %arg0, %c0_i32, %c0_i32_0 : i32, i32, i32
  }
  func.func @transform_1(%arg0: i32, %arg1: i32) -> (i32, i32, i32, i32) {
    %c0_i32 = arith.constant 0 : i32
    %c0_i32_0 = arith.constant 0 : i32
    %c0_i32_1 = arith.constant 0 : i32
    return %arg0, %c0_i32, %arg1, %c0_i32_0 : i32, i32, i32, i32
  }
  func.func @transform_2(%arg0: i32, %arg1: i32) -> (i32, i32, i32) {
    %c0_i32 = arith.constant 0 : i32
    %c0_i32_0 = arith.constant 0 : i32
    return %arg0, %arg1, %c0_i32 : i32, i32, i32
  }
}

</mosaic_0001>

<llo_original>
// kernel: tpu_custom_call.1
$region0: #{tpu_custom_call.1}
  #allocation0 [shape = 'u32[]', space=smem, size = 0x4, offset = 0x4, fixed_abs, tag = 'smem constant byte address 0x4 - core index']
  #allocation1 [shape = 'u32[72,128]{1,0:T(1,128)}', space=vmem, size = 0x9000, scoped, tag = 'internal scratch']
  %s0 = inlined_call_operand.vmem [shape: f32[2,20,20], index: 0, kind: input, shape index: {}]
  %s1 = inlined_call_operand.vmem [shape: f32[2,25,16,16], index: 1, kind: input, shape index: {}]
  %s2 = inlined_call_operand.hbm [shape: f32[2,16,16], index: 2, kind: output, shape index: {}]
  %s3 = sld [smem:[#allocation0]]
  $region79: #{tpu_custom_call.1} parent=0
    _
  %s5 = ssub.s32 1, %s3
  %s6 = scalar_select 0, %s5, %s3
  $region1: #{tpu_custom_call.1} parent=0
    #allocation2 [shape = 'u8[204800]{0}', space=vmem, size = 0x32000, scoped, tag = 'input window, operand 1']
    #allocation3 [shape = 'u8[8192]{0}', space=vmem, size = 0x2000, scoped, tag = 'output window, operand 0']
    #allocation4 [shape = 's32[2]{0}', space=sflag, size = 0x8, scoped, tag = 'scoped memory for tpu_custom_call.1']
    %7 = vsyncpa [#allocation4], 0
    %s8 = scalar_lea.sflag [#allocation4], 1
    %9 = vsyncpa %s8, 0
    loop: start=0, step=1, limit=6
    $region2: #{tpu_custom_call.1} parent=1 // loop_pre_header
      _
    $region3: #{tpu_custom_call.1} parent=1 // loop_header
      %s11 = sphi 0, %s15
      %p12 = scmp.ge.s32.totalorder %s11, 6
      %s18 = sphi 0, %s30
      %s19 = sphi 0, %s26
      %s20 = sphi 0, %s18
      %s21 = sphi 0, %s19
      %s22 = sphi 0, %s20
      %s23 = sphi 0, %s21
      %s33 = sphi 0, %s35
      %s36 = sphi 0, %s33
      %s37 = sphi 0, %s36
      %s53 = sphi 0, %s37
      %s61 = sphi 0, %s63
      %s64 = sphi 0, %s61
      %s65 = sphi 0, %s64
      %s81 = sphi 0, %s65
      %s89 = sphi 0, %s91
      %s92 = sphi 0, %s89
      %s93 = sphi 0, %s92
      %s109 = sphi 0, %s93
    $region4: #{tpu_custom_call.1} parent=1 // loop_header_branch
      %14 = sbr.rel (%p12) target = $region8
    $region5: #{tpu_custom_call.1} parent=1 // loop_body
      %s16 = ssub.s32 %s11, 1
      %s17 = ssub.s32 %s11, 2
      %s24 = sadd.s32 1, %s19
      %p25 = scmp.ge.s32.totalorder %s24, 2
      %s26 = scalar_select %p25, 0, %s24
      %s27 = sadd.s32 1, %s18
      %s28 = scalar_select %p25, %s27, %s18
      %p29 = scmp.ge.s32.totalorder %s28, 2
      %s30 = scalar_select %p29, 0, %s28
      %s31 = ssub.s32 %s18, %s30
      %p32 = scmp.eq.s32.totalorder %s31, 0
      %s34 = sadd.s32 %s33, 1
      %s35 = scalar_select %p32, %s33, %s34
      %p38 = pneg %p32
      %p39 = scmp.eq.s32.totalorder %s11, 3
      %p40 = por %p38, %p39
      %p41 = scmp.ne.s32.totalorder %s33, %s36
      %p42 = scmp.eq.s32.totalorder %s11, 0
      %p43 = por %p41, %p42
      %p44 = scmp.ne.s32.totalorder %s33, %s36
      %p45 = scmp.eq.s32.totalorder %s16, 3
      %p46 = por %p44, %p45
      %p47 = scmp.ne.s32.totalorder %s36, %s37
      %p48 = scmp.eq.s32.totalorder %s16, 0
      %p49 = por %p47, %p48
      %p50 = scmp.ne.s32.totalorder %s36, %s37
      %p51 = scmp.eq.s32.totalorder %s17, 3
      %p52 = por %p50, %p51
      %p54 = scmp.ne.s32.totalorder %s37, %s53
      %p55 = scmp.eq.s32.totalorder %s17, 0
      %p56 = por %p54, %p55
      %s57 = ssub.s32 %s18, %s30
      %s58 = ssub.s32 %s19, %s26
      %s59 = sor.u32 %s57, %s58
      %p60 = scmp.eq.s32.totalorder %s59, 0
      %s62 = sadd.s32 %s61, 1
      %s63 = scalar_select %p60, %s61, %s62
      %p66 = pneg %p60
      %p67 = scmp.eq.s32.totalorder %s11, 3
      %p68 = por %p66, %p67
      %p69 = scmp.ne.s32.totalorder %s61, %s64
      %p70 = scmp.eq.s32.totalorder %s11, 0
      %p71 = por %p69, %p70
      %p72 = scmp.ne.s32.totalorder %s61, %s64
      %p73 = scmp.eq.s32.totalorder %s16, 3
      %p74 = por %p72, %p73
      %p75 = scmp.ne.s32.totalorder %s64, %s65
      %p76 = scmp.eq.s32.totalorder %s16, 0
      %p77 = por %p75, %p76
      %p78 = scmp.ne.s32.totalorder %s64, %s65
      %p79 = scmp.eq.s32.totalorder %s17, 3
      %p80 = por %p78, %p79
      %p82 = scmp.ne.s32.totalorder %s65, %s81
      %p83 = scmp.eq.s32.totalorder %s17, 0
      %p84 = por %p82, %p83
      %s85 = ssub.s32 %s18, %s30
      %s86 = ssub.s32 %s19, %s26
      %s87 = sor.u32 %s85, %s86
      %p88 = scmp.eq.s32.totalorder %s87, 0
      %s90 = sadd.s32 %s89, 1
      %s91 = scalar_select %p88, %s89, %s90
      %p94 = pneg %p88
      %p95 = scmp.eq.s32.totalorder %s11, 3
      %p96 = por %p94, %p95
      %p97 = scmp.ne.s32.totalorder %s89, %s92
      %p98 = scmp.eq.s32.totalorder %s11, 0
      %p99 = por %p97, %p98
      %p100 = scmp.ne.s32.totalorder %s89, %s92
      %p101 = scmp.eq.s32.totalorder %s16, 3
      %p102 = por %p100, %p101
      %p103 = scmp.ne.s32.totalorder %s92, %s93
      %p104 = scmp.eq.s32.totalorder %s16, 0
      %p105 = por %p103, %p104
      %p106 = scmp.ne.s32.totalorder %s92, %s93
      %p107 = scmp.eq.s32.totalorder %s17, 3
      %p108 = por %p106, %p107
      %p110 = scmp.ne.s32.totalorder %s93, %s109
      %p111 = scmp.eq.s32.totalorder %s17, 0
      %p112 = por %p110, %p111
      %p113 = scmp.le.s32.totalorder 1, %s11
      %p114 = scmp.lt.s32.totalorder %s11, 5
      %p115 = pnand %p113, %p114
      %p116 = pneg %p115
      // Predicated region
      $region9: #{tpu_custom_call.1} parent=5 // pred_check
        _
      $region10: #{tpu_custom_call.1} parent=5 // pred_check_branch
        %118 = sbr.rel (%p115) target = $region12
      $region11: #{tpu_custom_call.1} parent=5 // pred_region
        %s119 = ssub.s32 %s11, 1
      $region12: #{tpu_custom_call.1} parent=5 // pred_fallthru
        _
      %p120 = scmp.lt.s32.totalorder %s11, 4
      // Predicated region
      $region13: #{tpu_custom_call.1} parent=5 // pred_check
        %p121 = pneg %p120
      $region14: #{tpu_custom_call.1} parent=5 // pred_check_branch
        %123 = sbr.rel (%p121) target = $region16
      $region15: #{tpu_custom_call.1} parent=5 // pred_region
        // Predicated region
        $region17: #{tpu_custom_call.1} parent=15 // pred_check
          %p124 = pneg %p43
        $region18: #{tpu_custom_call.1} parent=15 // pred_check_branch
          %126 = sbr.rel (%p124) target = $region20
        $region19: #{tpu_custom_call.1} parent=15 // pred_region
          %p127 = scmp.lt.s32.totalorder %s18, 1
          %s128 = scalar_select %p127, %s18, 1
          %s129 = smul.addr %s128, 3
          %s130 = smul.addr %s129, 8
          %s131 = scalar_lea.vmem %s0, %s130
        $region20: #{tpu_custom_call.1} parent=15 // pred_fallthru
          _
        // Predicated region
        $region21: #{tpu_custom_call.1} parent=15 // pred_check
          %p132 = pneg %p71
        $region22: #{tpu_custom_call.1} parent=15 // pred_check_branch
          %134 = sbr.rel (%p132) target = $region24
        $region23: #{tpu_custom_call.1} parent=15 // pred_region
          %s135 = sand.u32 %s61, 1
          %s136 = sand.u32 %s61, 1
          %s137 = smul.addr %s136, 200
          %s138 = scalar_lea.vmem [#allocation2], %s137
          %s139 = smul.addr %s18, 50
          %s140 = sadd.s32 %s19, %s139
          %s141 = smul.addr %s140, 8
          %s142 = scalar_lea.vmem %s1, %s141
          // Predicated region
          $region25: #{tpu_custom_call.1} parent=23 // pred_check
            _
          $region26: #{tpu_custom_call.1} parent=23 // pred_check_branch
            %144 = sbr.rel (0) target = $region28
          $region27: #{tpu_custom_call.1} parent=23 // pred_region
            // Predicated region
            $region29: #{tpu_custom_call.1} parent=27 // pred_check
              _
            $region30: #{tpu_custom_call.1} parent=27 // pred_check_branch
              %146 = sbr.rel (0) target = $region32
            $region31: #{tpu_custom_call.1} parent=27 // pred_region
              // Predicated region
              $region44: #{tpu_custom_call.1} parent=31 // pred_check
                _
              $region45: #{tpu_custom_call.1} parent=31 // pred_check_branch
                %210 = sbr.rel (0) target = $region47
              $region46: #{tpu_custom_call.1} parent=31 // pred_region
                loop: start=0, step=1, limit=1
                $region48: #{tpu_custom_call.1} parent=46 // loop_pre_header
                  _
                $region49: #{tpu_custom_call.1} parent=46 // loop_header
                  %s212 = sphi 0, %s216
                  %p213 = scmp.ge.s32.totalorder %s212, 1
                  %s217 = sphi %s142, %s142
                  %s218 = sphi %s138, %s138
                $region50: #{tpu_custom_call.1} parent=46 // loop_header_branch
                  %215 = sbr.rel (%p213) target = $region54
                $region51: #{tpu_custom_call.1} parent=46 // loop_body
                  %v219 = vld [vmem:[%s217] sm:$0xff]
                  %220 = vst [vmem:[%s218] sm:$0xff] %v219
                  %v221 = vld [vmem:[%s217 + $0x10] sm:$0xff]
                  %222 = vst [vmem:[%s218 + $0x8] sm:$0xff] %v221
                  %v223 = vld [vmem:[%s217 + $0x20] sm:$0xff]
                  %224 = vst [vmem:[%s218 + $0x10] sm:$0xff] %v223
                  %v225 = vld [vmem:[%s217 + $0x30] sm:$0xff]
                  %226 = vst [vmem:[%s218 + $0x18] sm:$0xff] %v225
                  %v227 = vld [vmem:[%s217 + $0x40] sm:$0xff]
                  %228 = vst [vmem:[%s218 + $0x20] sm:$0xff] %v227
                  %v229 = vld [vmem:[%s217 + $0x50] sm:$0xff]
                  %230 = vst [vmem:[%s218 + $0x28] sm:$0xff] %v229
                  %v231 = vld [vmem:[%s217 + $0x60] sm:$0xff]
                  %232 = vst [vmem:[%s218 + $0x30] sm:$0xff] %v231
                  %v233 = vld [vmem:[%s217 + $0x70] sm:$0xff]
                  %234 = vst [vmem:[%s218 + $0x38] sm:$0xff] %v233
                  %v235 = vld [vmem:[%s217 + $0x80] sm:$0xff]
                  %236 = vst [vmem:[%s218 + $0x40] sm:$0xff] %v235
                  %v237 = vld [vmem:[%s217 + $0x90] sm:$0xff]
                  %238 = vst [vmem:[%s218 + $0x48] sm:$0xff] %v237
                  %v239 = vld [vmem:[%s217 + $0xa0] sm:$0xff]
                  %240 = vst [vmem:[%s218 + $0x50] sm:$0xff] %v239
                  %v241 = vld [vmem:[%s217 + $0xb0] sm:$0xff]
                  %242 = vst [vmem:[%s218 + $0x58] sm:$0xff] %v241
                  %v243 = vld [vmem:[%s217 + $0xc0] sm:$0xff]
                  %244 = vst [vmem:[%s218 + $0x60] sm:$0xff] %v243
                  %v245 = vld [vmem:[%s217 + $0xd0] sm:$0xff]
                  %246 = vst [vmem:[%s218 + $0x68] sm:$0xff] %v245
                  %v247 = vld [vmem:[%s217 + $0xe0] sm:$0xff]
                  %248 = vst [vmem:[%s218 + $0x70] sm:$0xff] %v247
                  %v249 = vld [vmem:[%s217 + $0xf0] sm:$0xff]
                  %250 = vst [vmem:[%s218 + $0x78] sm:$0xff] %v249
                  %v251 = vld [vmem:[%s217 + $0x100] sm:$0xff]
                  %252 = vst [vmem:[%s218 + $0x80] sm:$0xff] %v251
                  %v253 = vld [vmem:[%s217 + $0x110] sm:$0xff]
                  %254 = vst [vmem:[%s218 + $0x88] sm:$0xff] %v253
                  %v255 = vld [vmem:[%s217 + $0x120] sm:$0xff]
                  %256 = vst [vmem:[%s218 + $0x90] sm:$0xff] %v255
                  %v257 = vld [vmem:[%s217 + $0x130] sm:$0xff]
                  %258 = vst [vmem:[%s218 + $0x98] sm:$0xff] %v257
                  %v259 = vld [vmem:[%s217 + $0x140] sm:$0xff]
                  %260 = vst [vmem:[%s218 + $0xa0] sm:$0xff] %v259
                  %v261 = vld [vmem:[%s217 + $0x150] sm:$0xff]
                  %262 = vst [vmem:[%s218 + $0xa8] sm:$0xff] %v261
                  %v263 = vld [vmem:[%s217 + $0x160] sm:$0xff]
                  %264 = vst [vmem:[%s218 + $0xb0] sm:$0xff] %v263
                  %v265 = vld [vmem:[%s217 + $0x170] sm:$0xff]
                  %266 = vst [vmem:[%s218 + $0xb8] sm:$0xff] %v265
                  %v267 = vld [vmem:[%s217 + $0x180] sm:$0xff]
                  %268 = vst [vmem:[%s218 + $0xc0] sm:$0xff] %v267
                $region52: #{tpu_custom_call.1} parent=46 // loop_footer
                  %s216 = sadd.s32 1, %s212
                $region53: #{tpu_custom_call.1} parent=46 // loop_footer_branch
                  %211 = sbr.rel target = $region49
                $region54: #{tpu_custom_call.1} parent=46 // loop_exit
                  _
              $region47: #{tpu_custom_call.1} parent=31 // pred_fallthru
                _
              // Predicated region
              $region55: #{tpu_custom_call.1} parent=31 // pred_check
                _
              $region56: #{tpu_custom_call.1} parent=31 // pred_check_branch
                %270 = sbr.rel target = $region58
              $region57: #{tpu_custom_call.1} parent=31 // pred_region
                _
              $region58: #{tpu_custom_call.1} parent=31 // pred_fallthru
                _
            $region32: #{tpu_custom_call.1} parent=27 // pred_fallthru
              _
            // Predicated region
            $region33: #{tpu_custom_call.1} parent=27 // pred_check
              _
            $region34: #{tpu_custom_call.1} parent=27 // pred_check_branch
              %148 = sbr.rel target = $region36
            $region35: #{tpu_custom_call.1} parent=27 // pred_region
              %s150 = ssub.s32 256, 1
              loop: start=0, step=1, limit=1
              $region37: #{tpu_custom_call.1} parent=35 // loop_pre_header
                _
              $region38: #{tpu_custom_call.1} parent=35 // loop_header
                %s152 = sphi 0, %s156
                %p153 = scmp.ge.s32.totalorder %s152, 1
                %s157 = sphi %s142, %s142
                %s158 = sphi %s138, %s138
              $region39: #{tpu_custom_call.1} parent=35 // loop_header_branch
                %155 = sbr.rel (%p153) target = $region43
              $region40: #{tpu_custom_call.1} parent=35 // loop_body
                %v159 = vld [vmem:[%s157] sm:%s150]
                %160 = vst [vmem:[%s158] sm:%s150] %v159
                %v161 = vld [vmem:[%s157 + $0x10] sm:%s150]
                %162 = vst [vmem:[%s158 + $0x8] sm:%s150] %v161
                %v163 = vld [vmem:[%s157 + $0x20] sm:%s150]
                %164 = vst [vmem:[%s158 + $0x10] sm:%s150] %v163
                %v165 = vld [vmem:[%s157 + $0x30] sm:%s150]
                %166 = vst [vmem:[%s158 + $0x18] sm:%s150] %v165
                %v167 = vld [vmem:[%s157 + $0x40] sm:%s150]
                %168 = vst [vmem:[%s158 + $0x20] sm:%s150] %v167
                %v169 = vld [vmem:[%s157 + $0x50] sm:%s150]
                %170 = vst [vmem:[%s158 + $0x28] sm:%s150] %v169
                %v171 = vld [vmem:[%s157 + $0x60] sm:%s150]
                %172 = vst [vmem:[%s158 + $0x30] sm:%s150] %v171
                %v173 = vld [vmem:[%s157 + $0x70] sm:%s150]
                %174 = vst [vmem:[%s158 + $0x38] sm:%s150] %v173
                %v175 = vld [vmem:[%s157 + $0x80] sm:%s150]
                %176 = vst [vmem:[%s158 + $0x40] sm:%s150] %v175
                %v177 = vld [vmem:[%s157 + $0x90] sm:%s150]
                %178 = vst [vmem:[%s158 + $0x48] sm:%s150] %v177
                %v179 = vld [vmem:[%s157 + $0xa0] sm:%s150]
                %180 = vst [vmem:[%s158 + $0x50] sm:%s150] %v179
                %v181 = vld [vmem:[%s157 + $0xb0] sm:%s150]
                %182 = vst [vmem:[%s158 + $0x58] sm:%s150] %v181
                %v183 = vld [vmem:[%s157 + $0xc0] sm:%s150]
                %184 = vst [vmem:[%s158 + $0x60] sm:%s150] %v183
                %v185 = vld [vmem:[%s157 + $0xd0] sm:%s150]
                %186 = vst [vmem:[%s158 + $0x68] sm:%s150] %v185
                %v187 = vld [vmem:[%s157 + $0xe0] sm:%s150]
                %188 = vst [vmem:[%s158 + $0x70] sm:%s150] %v187
                %v189 = vld [vmem:[%s157 + $0xf0] sm:%s150]
                %190 = vst [vmem:[%s158 + $0x78] sm:%s150] %v189
                %v191 = vld [vmem:[%s157 + $0x100] sm:%s150]
                %192 = vst [vmem:[%s158 + $0x80] sm:%s150] %v191
                %v193 = vld [vmem:[%s157 + $0x110] sm:%s150]
                %194 = vst [vmem:[%s158 + $0x88] sm:%s150] %v193
                %v195 = vld [vmem:[%s157 + $0x120] sm:%s150]
                %196 = vst [vmem:[%s158 + $0x90] sm:%s150] %v195
                %v197 = vld [vmem:[%s157 + $0x130] sm:%s150]
                %198 = vst [vmem:[%s158 + $0x98] sm:%s150] %v197
                %v199 = vld [vmem:[%s157 + $0x140] sm:%s150]
                %200 = vst [vmem:[%s158 + $0xa0] sm:%s150] %v199
                %v201 = vld [vmem:[%s157 + $0x150] sm:%s150]
                %202 = vst [vmem:[%s158 + $0xa8] sm:%s150] %v201
                %v203 = vld [vmem:[%s157 + $0x160] sm:%s150]
                %204 = vst [vmem:[%s158 + $0xb0] sm:%s150] %v203
                %v205 = vld [vmem:[%s157 + $0x170] sm:%s150]
                %206 = vst [vmem:[%s158 + $0xb8] sm:%s150] %v205
                %v207 = vld [vmem:[%s157 + $0x180] sm:%s150]
                %208 = vst [vmem:[%s158 + $0xc0] sm:%s150] %v207
              $region41: #{tpu_custom_call.1} parent=35 // loop_footer
                %s156 = sadd.s32 1, %s152
              $region42: #{tpu_custom_call.1} parent=35 // loop_footer_branch
                %151 = sbr.rel target = $region38
              $region43: #{tpu_custom_call.1} parent=35 // loop_exit
                _
            $region36: #{tpu_custom_call.1} parent=27 // pred_fallthru
              _
          $region28: #{tpu_custom_call.1} parent=23 // pred_fallthru
            _
          %271 = vnop
        $region24: #{tpu_custom_call.1} parent=15 // pred_fallthru
          _
      $region16: #{tpu_custom_call.1} parent=5 // pred_fallthru
        _
      %p272 = scmp.le.s32.totalorder 1, %s11
      %p273 = scmp.lt.s32.totalorder %s11, 5
      %p274 = pnand %p272, %p273
      %p275 = pneg %p274
      // Predicated region
      $region59: #{tpu_custom_call.1} parent=5 // pred_check
        _
      $region60: #{tpu_custom_call.1} parent=5 // pred_check_branch
        %277 = sbr.rel (%p274) target = $region62
      $region61: #{tpu_custom_call.1} parent=5 // pred_region
        %s278 = ssub.s32 %s11, 1
        %s279 = sand.u32 %s64, 1
        %s280 = sand.u32 %s64, 1
        %s281 = smul.addr %s280, 200
        %s282 = scalar_lea.vmem [#allocation2], %s281
        // Predicated region
        $region63: #{tpu_custom_call.1} parent=61 // pred_check
          %p283 = pneg %p77
        $region64: #{tpu_custom_call.1} parent=61 // pred_check_branch
          %285 = sbr.rel (%p283) target = $region66
        $region65: #{tpu_custom_call.1} parent=61 // pred_region
          _
        $region66: #{tpu_custom_call.1} parent=61 // pred_fallthru
          _
        %p286 = scmp.lt.s32.totalorder %s20, 1
        %s287 = scalar_select %p286, %s20, 1
        %s288 = smul.addr %s287, 3
        %s289 = smul.addr %s288, 8
        %s290 = scalar_lea.vmem %s0, %s289
        %p291 = pneg %p49
        %p292 = pneg %p46
        %s293 = sand.u32 %s64, 1
        %s294 = sand.u32 %s64, 1
        %s295 = smul.addr %s294, 200
        %s296 = scalar_lea.vmem [#allocation2], %s295
        %p297 = pneg %p77
        %p298 = pneg %p74
        %p299 = pneg %p105
        %p300 = pneg %p102
        %s301 = sand.u32 %s92, 1
        %s302 = scalar_lea.sflag [#allocation4], %s301
        %s303 = sand.u32 %s92, 1
        %s304 = smul.addr %s303, 8
        %s305 = scalar_lea.vmem [#allocation3], %s304
        %p306 = scmp.lt.s32.totalorder %s20, 1
        %s307 = scalar_select %p306, %s20, 1
        %s308 = smul.addr %s307, 3
        %s309 = smul.addr %s308, 8
        %s310 = scalar_lea.vmem %s0, %s309
        %s311 = smul.u32 %s21, 8
        %s312 = scalar_lea.vmem %s310, %s311
        %v313 = vld [vmem:[%s312] sm:$0xff]
        %v314 = vld [vmem:[%s282] sm:$0xff]
        %v315 = vmul.f32 %v313, %v314
        %v316 = vadd.f32 %v315, 0.0
        %s317 = scalar_lea.vmem %s282, 8 [#allocation2]
        %v318 = vld [vmem:[%s317] sm:$0xff]
        %320 = vrot.lane.b32.xlu0 %v318, 1
        %v321 = vpop.permute.xlu0 %320
        %v323 = vmul.f32 %v313, %v321
        %325 = vrot.lane.b32.xlu0 %v323, 127
        %v326 = vpop.permute.xlu0 %325
        %v328 = vadd.f32 %v316, %v326
        %s329 = scalar_lea.vmem %s282, 16 [#allocation2]
        %v330 = vld [vmem:[%s329] sm:$0xff]
        %332 = vrot.lane.b32.xlu0 %v330, 2
        %v333 = vpop.permute.xlu0 %332
        %v335 = vmul.f32 %v313, %v333
        %337 = vrot.lane.b32.xlu0 %v335, 126
        %v338 = vpop.permute.xlu0 %337
        %v340 = vadd.f32 %v328, %v338
        %s341 = scalar_lea.vmem %s282, 24 [#allocation2]
        %v342 = vld [vmem:[%s341] sm:$0xff]
        %344 = vrot.lane.b32.xlu0 %v342, 3
        %v345 = vpop.permute.xlu0 %344
        %v347 = vmul.f32 %v313, %v345
        %349 = vrot.lane.b32.xlu0 %v347, 125
        %v350 = vpop.permute.xlu0 %349
        %v352 = vadd.f32 %v340, %v350
        %s353 = scalar_lea.vmem %s282, 32 [#allocation2]
        %v354 = vld [vmem:[%s353] sm:$0xff]
        %356 = vrot.lane.b32.xlu0 %v354, 4
        %v357 = vpop.permute.xlu0 %356
        %v359 = vmul.f32 %v313, %v357
        %361 = vrot.lane.b32.xlu0 %v359, 124
        %v362 = vpop.permute.xlu0 %361
        %v364 = vadd.f32 %v352, %v362
        %s365 = sadd.s32 %s311, 1
        %s366 = scalar_lea.vmem %s310, %s365
        %v367 = vld [vmem:[%s366] sm:$0xff]
        %s368 = scalar_lea.vmem %s282, 40 [#allocation2]
        %v369 = vld [vmem:[%s368] sm:$0xff]
        %v370 = vmul.f32 %v367, %v369
        %v371 = vadd.f32 %v364, %v370
        %s372 = scalar_lea.vmem %s282, 48 [#allocation2]
        %v373 = vld [vmem:[%s372] sm:$0xff]
        %375 = vrot.lane.b32.xlu0 %v373, 1
        %v376 = vpop.permute.xlu0 %375
        %v378 = vmul.f32 %v367, %v376
        %380 = vrot.lane.b32.xlu0 %v378, 127
        %v381 = vpop.permute.xlu0 %380
        %v383 = vadd.f32 %v371, %v381
        %s384 = scalar_lea.vmem %s282, 56 [#allocation2]
        %v385 = vld [vmem:[%s384] sm:$0xff]
        %387 = vrot.lane.b32.xlu0 %v385, 2
        %v388 = vpop.permute.xlu0 %387
        %v390 = vmul.f32 %v367, %v388
        %392 = vrot.lane.b32.xlu0 %v390, 126
        %v393 = vpop.permute.xlu0 %392
        %v395 = vadd.f32 %v383, %v393
        %s396 = scalar_lea.vmem %s282, 64 [#allocation2]
        %v397 = vld [vmem:[%s396] sm:$0xff]
        %399 = vrot.lane.b32.xlu0 %v397, 3
        %v400 = vpop.permute.xlu0 %399
        %v402 = vmul.f32 %v367, %v400
        %404 = vrot.lane.b32.xlu0 %v402, 125
        %v405 = vpop.permute.xlu0 %404
        %v407 = vadd.f32 %v395, %v405
        %s408 = scalar_lea.vmem %s282, 72 [#allocation2]
        %v409 = vld [vmem:[%s408] sm:$0xff]
        %411 = vrot.lane.b32.xlu0 %v409, 4
        %v412 = vpop.permute.xlu0 %411
        %v414 = vmul.f32 %v367, %v412
        %416 = vrot.lane.b32.xlu0 %v414, 124
        %v417 = vpop.permute.xlu0 %416
        %v419 = vadd.f32 %v407, %v417
        %s420 = sadd.s32 %s311, 2
        %s421 = scalar_lea.vmem %s310, %s420
        %v422 = vld [vmem:[%s421] sm:$0xff]
        %s423 = scalar_lea.vmem %s282, 80 [#allocation2]
        %v424 = vld [vmem:[%s423] sm:$0xff]
        %v425 = vmul.f32 %v422, %v424
        %v426 = vadd.f32 %v419, %v425
        %s427 = scalar_lea.vmem %s282, 88 [#allocation2]
        %v428 = vld [vmem:[%s427] sm:$0xff]
        %430 = vrot.lane.b32.xlu0 %v428, 1
        %v431 = vpop.permute.xlu0 %430
        %v433 = vmul.f32 %v422, %v431
        %435 = vrot.lane.b32.xlu0 %v433, 127
        %v436 = vpop.permute.xlu0 %435
        %v438 = vadd.f32 %v426, %v436
        %s439 = scalar_lea.vmem %s282, 96 [#allocation2]
        %v440 = vld [vmem:[%s439] sm:$0xff]
        %442 = vrot.lane.b32.xlu0 %v440, 2
        %v443 = vpop.permute.xlu0 %442
        %v445 = vmul.f32 %v422, %v443
        %447 = vrot.lane.b32.xlu0 %v445, 126
        %v448 = vpop.permute.xlu0 %447
        %v450 = vadd.f32 %v438, %v448
        %s451 = scalar_lea.vmem %s282, 104 [#allocation2]
        %v452 = vld [vmem:[%s451] sm:$0xff]
        %454 = vrot.lane.b32.xlu0 %v452, 3
        %v455 = vpop.permute.xlu0 %454
        %v457 = vmul.f32 %v422, %v455
        %459 = vrot.lane.b32.xlu0 %v457, 125
        %v460 = vpop.permute.xlu0 %459
        %v462 = vadd.f32 %v450, %v460
        %s463 = scalar_lea.vmem %s282, 112 [#allocation2]
        %v464 = vld [vmem:[%s463] sm:$0xff]
        %466 = vrot.lane.b32.xlu0 %v464, 4
        %v467 = vpop.permute.xlu0 %466
        %v469 = vmul.f32 %v422, %v467
        %471 = vrot.lane.b32.xlu0 %v469, 124
        %v472 = vpop.permute.xlu0 %471
        %v474 = vadd.f32 %v462, %v472
        %s475 = sadd.s32 %s311, 3
        %s476 = scalar_lea.vmem %s310, %s475
        %v477 = vld [vmem:[%s476] sm:$0xff]
        %s478 = scalar_lea.vmem %s282, 120 [#allocation2]
        %v479 = vld [vmem:[%s478] sm:$0xff]
        %v480 = vmul.f32 %v477, %v479
        %v481 = vadd.f32 %v474, %v480
        %s482 = scalar_lea.vmem %s282, 128 [#allocation2]
        %v483 = vld [vmem:[%s482] sm:$0xff]
        %485 = vrot.lane.b32.xlu0 %v483, 1
        %v486 = vpop.permute.xlu0 %485
        %v488 = vmul.f32 %v477, %v486
        %490 = vrot.lane.b32.xlu0 %v488, 127
        %v491 = vpop.permute.xlu0 %490
        %v493 = vadd.f32 %v481, %v491
        %s494 = scalar_lea.vmem %s282, 136 [#allocation2]
        %v495 = vld [vmem:[%s494] sm:$0xff]
        %497 = vrot.lane.b32.xlu0 %v495, 2
        %v498 = vpop.permute.xlu0 %497
        %v500 = vmul.f32 %v477, %v498
        %502 = vrot.lane.b32.xlu0 %v500, 126
        %v503 = vpop.permute.xlu0 %502
        %v505 = vadd.f32 %v493, %v503
        %s506 = scalar_lea.vmem %s282, 144 [#allocation2]
        %v507 = vld [vmem:[%s506] sm:$0xff]
        %509 = vrot.lane.b32.xlu0 %v507, 3
        %v510 = vpop.permute.xlu0 %509
        %v512 = vmul.f32 %v477, %v510
        %514 = vrot.lane.b32.xlu0 %v512, 125
        %v515 = vpop.permute.xlu0 %514
        %v517 = vadd.f32 %v505, %v515
        %s518 = scalar_lea.vmem %s282, 152 [#allocation2]
        %v519 = vld [vmem:[%s518] sm:$0xff]
        %521 = vrot.lane.b32.xlu0 %v519, 4
        %v522 = vpop.permute.xlu0 %521
        %v524 = vmul.f32 %v477, %v522
        %526 = vrot.lane.b32.xlu0 %v524, 124
        %v527 = vpop.permute.xlu0 %526
        %v529 = vadd.f32 %v517, %v527
        %s530 = sadd.s32 %s311, 4
        %s531 = scalar_lea.vmem %s310, %s530
        %v532 = vld [vmem:[%s531] sm:$0xff]
        %s533 = scalar_lea.vmem %s282, 160 [#allocation2]
        %v534 = vld [vmem:[%s533] sm:$0xff]
        %v535 = vmul.f32 %v532, %v534
        %v536 = vadd.f32 %v529, %v535
        %s537 = scalar_lea.vmem %s282, 168 [#allocation2]
        %v538 = vld [vmem:[%s537] sm:$0xff]
        %540 = vrot.lane.b32.xlu0 %v538, 1
        %v541 = vpop.permute.xlu0 %540
        %v543 = vmul.f32 %v532, %v541
        %545 = vrot.lane.b32.xlu0 %v543, 127
        %v546 = vpop.permute.xlu0 %545
        %v548 = vadd.f32 %v536, %v546
        %s549 = scalar_lea.vmem %s282, 176 [#allocation2]
        %v550 = vld [vmem:[%s549] sm:$0xff]
        %552 = vrot.lane.b32.xlu0 %v550, 2
        %v553 = vpop.permute.xlu0 %552
        %v555 = vmul.f32 %v532, %v553
        %557 = vrot.lane.b32.xlu0 %v555, 126
        %v558 = vpop.permute.xlu0 %557
        %v560 = vadd.f32 %v548, %v558
        %s561 = scalar_lea.vmem %s282, 184 [#allocation2]
        %v562 = vld [vmem:[%s561] sm:$0xff]
        %564 = vrot.lane.b32.xlu0 %v562, 3
        %v565 = vpop.permute.xlu0 %564
        %v567 = vmul.f32 %v532, %v565
        %569 = vrot.lane.b32.xlu0 %v567, 125
        %v570 = vpop.permute.xlu0 %569
        %v572 = vadd.f32 %v560, %v570
        %s573 = scalar_lea.vmem %s282, 192 [#allocation2]
        %v574 = vld [vmem:[%s573] sm:$0xff]
        %576 = vrot.lane.b32.xlu0 %v574, 4
        %v577 = vpop.permute.xlu0 %576
        %v579 = vmul.f32 %v532, %v577
        %581 = vrot.lane.b32.xlu0 %v579, 124
        %v582 = vpop.permute.xlu0 %581
        %v584 = vadd.f32 %v572, %v582
        %vm585 = vcmask 130048
        %586 = vst.msk [vmem:[%s305] sm:$0xff] %vm585, %v584
        %s587 = sand.u32 %s92, 1
        %s588 = scalar_lea.sflag [#allocation4], %s587
        %s589 = sand.u32 %s92, 1
        %s590 = smul.addr %s589, 8
        %s591 = scalar_lea.vmem [#allocation3], %s590
        // Predicated region
        $region67: #{tpu_custom_call.1} parent=61 // pred_check
          %p592 = pneg %p102
        $region68: #{tpu_custom_call.1} parent=61 // pred_check_branch
          %594 = sbr.rel (%p592) target = $region70
        $region69: #{tpu_custom_call.1} parent=61 // pred_region
          %596 = vsyncadd %s588, 0
          %s597 = smul.addr %s20, 2
          %s598 = sadd.s32 %s21, %s597
          %s599 = smul.addr %s598, 8
          %s600 = scalar_lea.hbm %s2, %s599
          %s602 = sshll.u32 %s591, 4
          %s603 = int_to_ptr.vmem [resolvable:$true] %s602
          %s604 = sshll.u32 %s600, 4
          %s605 = int_to_ptr.hbm [resolvable:$true] %s604
          %607 = dma.vmem_to_hbm [thread:$0]  %s603, 128, %s605, %s588
        $region70: #{tpu_custom_call.1} parent=61 // pred_fallthru
          _
      $region62: #{tpu_custom_call.1} parent=5 // pred_fallthru
        _
      %p608 = scmp.le.s32.totalorder 2, %s11
      // Predicated region
      $region71: #{tpu_custom_call.1} parent=5 // pred_check
        %p609 = pneg %p608
      $region72: #{tpu_custom_call.1} parent=5 // pred_check_branch
        %611 = sbr.rel (%p609) target = $region74
      $region73: #{tpu_custom_call.1} parent=5 // pred_region
        %s612 = ssub.s32 %s11, 2
        // Predicated region
        $region75: #{tpu_custom_call.1} parent=73 // pred_check
          %p613 = pneg %p108
        $region76: #{tpu_custom_call.1} parent=73 // pred_check_branch
          %615 = sbr.rel (%p613) target = $region78
        $region77: #{tpu_custom_call.1} parent=73 // pred_region
          %s616 = sand.u32 %s93, 1
          %s617 = scalar_lea.sflag [#allocation4], %s616
          %s618 = sand.u32 %s93, 1
          %s619 = smul.addr %s618, 8
          %s620 = scalar_lea.vmem [#allocation3], %s619
          %622 = dma.done %s617, 128
        $region78: #{tpu_custom_call.1} parent=73 // pred_fallthru
          _
      $region74: #{tpu_custom_call.1} parent=5 // pred_fallthru
        _
    $region6: #{tpu_custom_call.1} parent=1 // loop_footer
      %s15 = sadd.s32 1, %s11
    $region7: #{tpu_custom_call.1} parent=1 // loop_footer_branch
      %10 = sbr.rel target = $region3
    $region8: #{tpu_custom_call.1} parent=1 // loop_exit
      _
    %623 = vsyncpa [#allocation4], 1
    %s624 = scalar_lea.sflag [#allocation4], 1
    %625 = vsyncpa %s624, 1

</llo_original>
